<compile_context>
chip_gen: v5e
topology: v5e:2x2
jax: 0.10.0
libtpu: 0.0.40
codegen_flags: <defaults>
</compile_context>

<pallas_src>
import jax
import jax.numpy as jnp
from jax import lax
from jax.experimental import pallas as pl
from jax.experimental.pallas import tpu as pltpu

ALPHA = 1.4
GAMMA = 2                        # implemented as an explicit multiply
EPS = 1e-08

LANES = 128
ROW_ALIGN = 16                   # keeps (rows, 128) tiles legal for f32 & bf16
ALIGN_ELEMS = ROW_ALIGN * LANES  # 2048 elements
MAX_BLOCK_ROWS = 8192            # 8192*128*4 B = 4 MiB per f32 input tile
CHUNK_ROWS = 512                 # inner sub-chunk (64 f32 vregs)

# loss = -(1-pt)^2 * log(pt) * (t*ALPHA + (1-t)*(2-ALPHA))
#      =  (1-pt)^2 * log(pt) * (W_BIAS + W_SCALE * t)
W_SCALE = 2.0 - 2.0 * ALPHA
W_BIAS = ALPHA - 2.0


def _focal_loss_elem(x_raw, t_raw):
    """Elementwise sigmoid focal loss in f32 (sign folded into the weight)."""
    x = x_raw.astype(jnp.float32)
    t = t_raw.astype(jnp.float32)
    p = jax.nn.sigmoid(x)
    # Upper clamp to 1 - 1e-8 rounds to 1.0 in f32 (no-op); the lower clamp is
    # what actually keeps log(pt) finite, so only that one is emitted.
    p = jnp.maximum(p, EPS)
    t = jnp.clip(t, EPS, 1.0)
    pt = (1.0 - t) * (1.0 - p) + t * p
    one_m_pt = 1.0 - pt
    w_neg = W_BIAS + W_SCALE * t          # == -(t*ALPHA + (1-t)*(2-ALPHA))
    return one_m_pt * one_m_pt * jnp.log(pt) * w_neg   # gamma == 2


def _make_focal_sum_kernel(block_rows, rows_kernel, total_blocks,
                           steps_per_core, needs_edge):
    """Build the kernel; all block bookkeeping is static and closed over."""
    chunk_rows = min(CHUNK_ROWS, block_rows)
    num_full_chunks = block_rows // chunk_rows
    rem_rows = block_rows % chunk_rows      # only nonzero in the 1-block case

    def block_partial_sum(x_ref, t_ref, valid_rows):
        """(8,128) f32 partial sum of this block; rows >= valid_rows masked."""

        def chunk_partial(start, nrows):
            loss = _focal_loss_elem(x_ref[pl.ds(start, nrows), :],
                                    t_ref[pl.ds(start, nrows), :])
            if valid_rows is not None:
                row = start + lax.broadcasted_iota(jnp.int32, (nrows, LANES), 0)
                # where (not multiply) so garbage in OOB rows is dropped cleanly.
                loss = jnp.where(row < valid_rows, loss, 0.0)
            # nrows is a multiple of 8 -> pure vreg-wise VPU adds, no XLU.
            return loss.reshape(-1, 8, LANES).sum(axis=0)

        def body(c, acc):
            start = pl.multiple_of(c * chunk_rows, chunk_rows)
            return acc + chunk_partial(start, chunk_rows)

        acc = jnp.zeros((8, LANES), jnp.float32)
        acc = lax.fori_loop(0, num_full_chunks, body, acc, unroll=True)
        if rem_rows:
            acc = acc + chunk_partial(num_full_chunks * chunk_rows, rem_rows)
        return acc

    def kernel(x_ref, t_ref, sum_ref):
        i = pl.program_id(0)     # "parallel" axis -> one per TensorCore
        j = pl.program_id(1)     # "arbitrary" streaming axis

        @pl.when(j == 0)
        def _():
            sum_ref[...] = jnp.zeros_like(sum_ref)

        if not needs_edge:
            # Grid tiles the input exactly: no mask code is emitted at all.
            sum_ref[...] += block_partial_sum(x_ref, t_ref, None)
        else:
            blk = i * steps_per_core + j
            is_edge = blk >= total_blocks - 1

            @pl.when(jnp.logical_not(is_edge))
            def _():
                sum_ref[...] += block_partial_sum(x_ref, t_ref, None)

            @pl.when(is_edge)
            def _():
                # Row threshold for this block.  Handles both the ragged final
                # block (0 < valid < block_rows) and the duplicated step of the
                # 2-way core split (valid <= 0 -> contributes nothing).  Row,
                # not flat-element, arithmetic -> no int32 overflow.
                valid = jnp.int32(rows_kernel) - blk * block_rows
                sum_ref[...] += block_partial_sum(x_ref, t_ref, valid)

    return kernel


def focal_loss_2d(outputs, targets, *, cast_targets_to_bf16=True):
    """Sigmoid focal loss, mean over all elements (== FocalLoss2d.forward)."""
    assert outputs.shape == targets.shape
    n = outputs.size                        # static Python int
    if n == 0:
        return jnp.float32(jnp.nan)         # torch .mean() of empty is nan

    x = outputs.reshape(-1)
    t = targets.reshape(-1)
    # bf16 targets: exact for hard {0,1} labels, halves the target HBM stream.
    if cast_targets_to_bf16 and t.dtype.itemsize > 2:
        t = t.astype(jnp.bfloat16)

    # Kernel consumes the 2048-element-aligned prefix (free reshape when n is
    # already aligned, which is the common NCHW case); the < 2048-element
    # remainder is reduced in plain JAX.  No full-tensor pad copy.
    rows_kernel = (n // ALIGN_ELEMS) * ROW_ALIGN
    n_kernel = rows_kernel * LANES

    total = jnp.zeros((), jnp.float32)

    if rows_kernel > 0:
        x2 = (x if n_kernel == n else x[:n_kernel]).reshape(rows_kernel, LANES)
        t2 = (t if n_kernel == n else t[:n_kernel]).reshape(rows_kernel, LANES)

        block_rows = min(MAX_BLOCK_ROWS, rows_kernel)
        total_blocks = pl.cdiv(rows_kernel, block_rows)

        # Always split streaming work across 2 TensorCores when there is more
        # than one block (v7x); harmless (sequential) on 1-TC chips.  An odd
        # block count costs at most one duplicated, fully-masked block.
        n_par = 2 if total_blocks > 1 else 1
        steps_per_core = pl.cdiv(total_blocks, n_par)
        grid = (n_par, steps_per_core)

        needs_edge = (rows_kernel % block_rows != 0) or (
            n_par * steps_per_core != total_blocks)

        last_blk = total_blocks - 1

        def in_index_map(i, j):
            blk = i * steps_per_core + j
            # Clamp duplicated steps of the 2-way split onto a real block so
            # the DMA stays in bounds; their contribution is masked to zero.
            return (jnp.minimum(blk, last_blk), 0)

        in_spec = pl.BlockSpec((block_rows, LANES), in_index_map)
        out_spec = pl.BlockSpec((8, LANES), lambda i, j: (i, 0))

        kernel = _make_focal_sum_kernel(block_rows, rows_kernel, total_blocks,
                                        steps_per_core, needs_edge)

        partials = pl.pallas_call(
            kernel,
            out_shape=jax.ShapeDtypeStruct((n_par * 8, LANES), jnp.float32),
            grid_spec=pltpu.PrefetchScalarGridSpec(
                num_scalar_prefetch=0,
                grid=grid,
                in_specs=[in_spec, in_spec],
                out_specs=out_spec,
            ),
            compiler_params=pltpu.CompilerParams(
                # If a profile shows the leading axis not sharding across the
                # two v7x TensorCores, switch it to pltpu.CORE_PARALLEL.
                dimension_semantics=("parallel", "arbitrary"),
                vmem_limit_bytes=40 * 1024 * 1024,
            ),
        )(x2, t2)

        # Single cross-lane reduction + mean normalisation outside the kernel.
        total = total + jnp.sum(partials, dtype=jnp.float32)

    if n_kernel < n:
        total = total + jnp.sum(_focal_loss_elem(x[n_kernel:], t[n_kernel:]),
                                dtype=jnp.float32)

    return total / n


def focal_loss_2d_ref(outputs, targets):
    """Pure-JAX reference matching the PyTorch forward exactly."""
    p = jax.nn.sigmoid(outputs.astype(jnp.float32))
    t = targets.astype(jnp.float32)
    p = jnp.clip(p, EPS, 1.0 - EPS)
    t = jnp.clip(t, EPS, 1.0 - EPS)
    pt = (1.0 - t) * (1.0 - p) + t * p
    w = t * ALPHA + (1.0 - t) * (2.0 - ALPHA)
    return jnp.mean(-((1.0 - pt) ** GAMMA) * jnp.log(pt) * w)


if __name__ == "__main__":
    key = jax.random.PRNGKey(0)
    k1, k2, k3, k4 = jax.random.split(key, 4)

    # Primary check: aligned NCHW tensor (2048 elements -> pure kernel path).
    B, C, H, W = 2, 4, 16, 16
    outputs = jax.random.normal(k1, (B, C, H, W), dtype=jnp.float32)
    targets = (jax.random.uniform(k2, (B, C, H, W)) > 0.5).astype(jnp.float32)

    loss = jax.block_until_ready(focal_loss_2d(outputs, targets))
    ref = jax.block_until_ready(focal_loss_2d_ref(outputs, targets))
    assert jnp.allclose(loss, ref, rtol=1e-5, atol=1e-6), (loss, ref)

    # Secondary check: misaligned size (7200 elements) -> kernel prefix + JAX tail.
    outputs2 = jax.random.normal(k3, (2, 4, 30, 30), dtype=jnp.float32)
    targets2 = (jax.random.uniform(k4, (2, 4, 30, 30)) > 0.5).astype(jnp.float32)
    loss2 = jax.block_until_ready(focal_loss_2d(outputs2, targets2))
    ref2 = jax.block_until_ready(focal_loss_2d_ref(outputs2, targets2))
    assert jnp.allclose(loss2, ref2, rtol=1e-5, atol=1e-6), (loss2, ref2)

    print("KERNEL_OK")
</pallas_src>

<mosaic_0001>
module attributes {stable_mosaic.version = 11 : i64} {
  func.func @kernel(%arg0: i32, %arg1: i32, %arg2: memref<16x128xf32, #tpu.memory_space<vmem>>, %arg3: memref<16x128xbf16, #tpu.memory_space<vmem>>, %arg4: memref<8x128xf32, #tpu.memory_space<vmem>>) attributes {dimension_semantics = [#tpu.dimension_semantics<parallel>, #tpu.dimension_semantics<arbitrary>], iteration_bounds = array<i64: 1, 1>, scalar_prefetch = 0 : i64, scratch_operands = 0 : i64, tpu.core_type = #tpu.core_type<tc>, window_params = [{transform_indices = @transform_0, window_bounds = array<i64: 16, 128>}, {transform_indices = @transform_1, window_bounds = array<i64: 16, 128>}, {transform_indices = @transform_2, window_bounds = array<i64: 8, 128>}]} {
    %c0_i32 = arith.constant 0 : i32
    %0 = arith.cmpi eq, %arg1, %c0_i32 : i32
    %1 = arith.extui %0 : i1 to i32
    %c0_i32_0 = arith.constant 0 : i32
    %2 = arith.cmpi ne, %1, %c0_i32_0 : i32
    scf.if %2 {
      %cst_17 = arith.constant 0.000000e+00 : f32
      %45 = vector.broadcast %cst_17 : f32 to vector<8x128xf32>
      %c0_18 = arith.constant 0 : index
      %c0_19 = arith.constant 0 : index
      %46 = vector.load %arg4[%c0_18, %c0_19] : memref<8x128xf32, #tpu.memory_space<vmem>>, vector<8x128xf32>
      tpu.vector_store %arg4[%c0_18, %c0_19], %45 {strides = array<i32>} : memref<8x128xf32, #tpu.memory_space<vmem>>, vector<8x128xf32>,
    } else {
    }
    %c0 = arith.constant 0 : index
    %c0_1 = arith.constant 0 : index
    %3 = vector.load %arg4[%c0, %c0_1] : memref<8x128xf32, #tpu.memory_space<vmem>>, vector<8x128xf32>
    %cst = arith.constant 0.000000e+00 : f32
    %4 = vector.broadcast %cst : f32 to vector<8x128xf32>
    %c0_i32_2 = arith.constant 0 : i32
    %c16_i32 = arith.constant 16 : i32
    %5 = arith.muli %c0_i32_2, %c16_i32 : i32
    %6 = tpu.assume_multiple %5, 16 : i32
    %7 = arith.index_cast %6 : i32 to index
    %c0_3 = arith.constant 0 : index
    %8 = vector.load %arg2[%7, %c0_3] : memref<16x128xf32, #tpu.memory_space<vmem>>, vector<16x128xf32>
    %9 = arith.index_cast %6 : i32 to index
    %c0_4 = arith.constant 0 : index
    %10 = vector.load %arg3[%9, %c0_4] : memref<16x128xbf16, #tpu.memory_space<vmem>>, vector<16x128xbf16>
    %11 = arith.extf %10 : vector<16x128xbf16> to vector<16x128xf32>
    %12 = arith.negf %8 : vector<16x128xf32>
    %13 = math.exp %12 : vector<16x128xf32>
    %cst_5 = arith.constant 1.000000e+00 : f32
    %14 = vector.broadcast %cst_5 : f32 to vector<16x128xf32>
    %15 = arith.addf %14, %13 : vector<16x128xf32>
    %16 = arith.divf %14, %15 : vector<16x128xf32>
    %cst_6 = arith.constant 9.99999993E-9 : f32
    %17 = vector.broadcast %cst_6 : f32 to vector<16x128xf32>
    %18 = arith.maximumf %16, %17 : vector<16x128xf32>
    %cst_7 = arith.constant 9.99999993E-9 : f32
    %cst_8 = arith.constant 1.000000e+00 : f32
    %19 = vector.broadcast %cst_7 : f32 to vector<16x128xf32>
    %20 = arith.maximumf %19, %11 : vector<16x128xf32>
    %21 = vector.broadcast %cst_8 : f32 to vector<16x128xf32>
    %22 = arith.minimumf %21, %20 : vector<16x128xf32>
    %cst_9 = arith.constant 1.000000e+00 : f32
    %23 = vector.broadcast %cst_9 : f32 to vector<16x128xf32>
    %24 = arith.subf %23, %22 : vector<16x128xf32>
    %cst_10 = arith.constant 1.000000e+00 : f32
    %25 = vector.broadcast %cst_10 : f32 to vector<16x128xf32>
    %26 = arith.subf %25, %18 : vector<16x128xf32>
    %27 = arith.mulf %24, %26 : vector<16x128xf32>
    %28 = arith.mulf %22, %18 : vector<16x128xf32>
    %29 = arith.addf %27, %28 : vector<16x128xf32>
    %cst_11 = arith.constant 1.000000e+00 : f32
    %30 = vector.broadcast %cst_11 : f32 to vector<16x128xf32>
    %31 = arith.subf %30, %29 : vector<16x128xf32>
    %cst_12 = arith.constant -8.000000e-01 : f32
    %32 = vector.broadcast %cst_12 : f32 to vector<16x128xf32>
    %33 = arith.mulf %32, %22 : vector<16x128xf32>
    %cst_13 = arith.constant -6.000000e-01 : f32
    %34 = vector.broadcast %cst_13 : f32 to vector<16x128xf32>
    %35 = arith.addf %34, %33 : vector<16x128xf32>
    %36 = arith.mulf %31, %31 : vector<16x128xf32>
    %37 = math.log %29 : vector<16x128xf32>
    %38 = arith.mulf %36, %37 : vector<16x128xf32>
    %39 = arith.mulf %38, %35 : vector<16x128xf32>
    %40 = vector.shape_cast %39 : vector<16x128xf32> to vector<2x8x128xf32>
    %cst_14 = arith.constant dense<0.000000e+00> : vector<8x128xf32>
    %41 = vector.multi_reduction <add>, %40, %cst_14 [0] : vector<2x8x128xf32> to vector<8x128xf32>
    %42 = arith.addf %4, %41 : vector<8x128xf32>
    %c1_i32 = arith.constant 1 : i32
    %43 = arith.addf %3, %42 : vector<8x128xf32>
    %c0_15 = arith.constant 0 : index
    %c0_16 = arith.constant 0 : index
    %44 = vector.load %arg4[%c0_15, %c0_16] : memref<8x128xf32, #tpu.memory_space<vmem>>, vector<8x128xf32>
    tpu.vector_store %arg4[%c0_15, %c0_16], %43 {strides = array<i32>} : memref<8x128xf32, #tpu.memory_space<vmem>>, vector<8x128xf32>,
    return
  }
  func.func @transform_0(%arg0: i32, %arg1: i32) -> (i32, i32) {
    %c1_i32 = arith.constant 1 : i32
    %0 = arith.muli %arg0, %c1_i32 : i32
    %1 = arith.addi %0, %arg1 : i32
    %c0_i32 = arith.constant 0 : i32
    %2 = arith.minsi %1, %c0_i32 : i32
    %c0_i32_0 = arith.constant 0 : i32
    %c0_i32_1 = arith.constant 0 : i32
    return %2, %c0_i32_0 : i32, i32
  }
  func.func @transform_1(%arg0: i32, %arg1: i32) -> (i32, i32) {
    %c1_i32 = arith.constant 1 : i32
    %0 = arith.muli %arg0, %c1_i32 : i32
    %1 = arith.addi %0, %arg1 : i32
    %c0_i32 = arith.constant 0 : i32
    %2 = arith.minsi %1, %c0_i32 : i32
    %c0_i32_0 = arith.constant 0 : i32
    %c0_i32_1 = arith.constant 0 : i32
    return %2, %c0_i32_0 : i32, i32
  }
  func.func @transform_2(%arg0: i32, %arg1: i32) -> (i32, i32) {
    %c0_i32 = arith.constant 0 : i32
    %c0_i32_0 = arith.constant 0 : i32
    return %arg0, %c0_i32 : i32, i32
  }
}

</mosaic_0001>

<llo_original>
// kernel: tpu_custom_call.1
$region0: #{tpu_custom_call.1}
  #allocation0 [shape = 'u32[]', space=smem, size = 0x4, offset = 0x4, fixed_abs, tag = 'smem constant byte address 0x4 - core index']
  #allocation1 [shape = 'u32[72,128]{1,0:T(1,128)}', space=vmem, size = 0x9000, scoped, tag = 'internal scratch']
  %s0 = inlined_call_operand.hbm [shape: f32[16,128], index: 0, kind: input, shape index: {}]
  %s1 = inlined_call_operand.hbm [shape: bf16[16,128], index: 1, kind: input, shape index: {}]
  %s2 = inlined_call_operand.hbm [shape: f32[8,128], index: 2, kind: output, shape index: {}]
  %s3 = sld [smem:[#allocation0]]
  $region30: #{tpu_custom_call.1} parent=0
    _
  %s5 = ssub.s32 1, %s3
  %s6 = scalar_select 0, %s5, %s3
  $region1: #{tpu_custom_call.1} parent=0
    #allocation2 [shape = 'u8[8192]{0}', space=vmem, size = 0x2000, scoped, tag = 'input window, operand 0, single buffered']
    #allocation3 [shape = 's32[1]{0}', space=sflag, size = 0x4, scoped, tag = 'scoped memory for tpu_custom_call.1']
    #allocation4 [shape = 's32[1]{0}', space=sflag, size = 0x4, scoped, tag = 'scoped memory for tpu_custom_call.1']
    #allocation5 [shape = 'u8[4096]{0}', space=vmem, size = 0x1000, scoped, tag = 'input window, operand 1, single buffered']
    #allocation6 [shape = 's32[1]{0}', space=sflag, size = 0x4, scoped, tag = 'scoped memory for tpu_custom_call.1']
    #allocation7 [shape = 'u8[4096]{0}', space=vmem, size = 0x1000, scoped, tag = 'output window, operand 0, single buffered']
    %7 = vsyncpa [#allocation3], 0
    %8 = vsyncpa [#allocation6], 0
    %9 = vsyncpa [#allocation4], 0
    // Predicated region
    $region2: #{tpu_custom_call.1} parent=1 // pred_check
      _
    $region3: #{tpu_custom_call.1} parent=1 // pred_check_branch
      %11 = sbr.rel (0) target = $region5
    $region4: #{tpu_custom_call.1} parent=1 // pred_region
      %s12 = sadd.s32 0, 0
      %p13 = scmp.lt.s32.totalorder %s12, 0
      %s14 = scalar_select %p13, %s12, 0
      %s15 = smul.u32 2, %s14
      %17 = vsyncadd [#allocation3], 0
      %s18 = smul.addr %s15, 8
      %s19 = scalar_lea.hbm %s0, %s18
      %s20 = sshll.u32 %s19, 4
      %s21 = int_to_ptr.hbm [resolvable:$true] %s20
      %s22 = sshll.u32 [#allocation2], 4
      %s23 = int_to_ptr.vmem [resolvable:$true] %s22
      %28 = dma.hbm_to_vmem [thread:$0]  %s21, 256, %s23, [#allocation3], 128, 128, 8
    $region5: #{tpu_custom_call.1} parent=1 // pred_fallthru
      _
    // Predicated region
    $region6: #{tpu_custom_call.1} parent=1 // pred_check
      _
    $region7: #{tpu_custom_call.1} parent=1 // pred_check_branch
      %30 = sbr.rel (0) target = $region9
    $region8: #{tpu_custom_call.1} parent=1 // pred_region
      %s31 = sadd.s32 0, 0
      %p32 = scmp.lt.s32.totalorder %s31, 0
      %s33 = scalar_select %p32, %s31, 0
      %s34 = smul.u32 2, %s33
      %36 = vsyncadd [#allocation6], 0
      %s37 = smul.addr %s34, 4
      %s38 = scalar_lea.hbm %s1, %s37
      %s39 = sshll.u32 %s38, 4
      %s40 = int_to_ptr.hbm [resolvable:$true] %s39
      %s41 = sshll.u32 [#allocation5], 4
      %s42 = int_to_ptr.vmem [resolvable:$true] %s41
      %47 = dma.hbm_to_vmem [thread:$0]  %s40, 128, %s42, [#allocation6], 64, 64, 4
    $region9: #{tpu_custom_call.1} parent=1 // pred_fallthru
      _
    // Predicated region
    $region10: #{tpu_custom_call.1} parent=1 // pred_check
      _
    $region11: #{tpu_custom_call.1} parent=1 // pred_check_branch
      %49 = sbr.rel (0) target = $region13
    $region12: #{tpu_custom_call.1} parent=1 // pred_region
      %51 = dma.done [#allocation3], 256
    $region13: #{tpu_custom_call.1} parent=1 // pred_fallthru
      _
    // Predicated region
    $region14: #{tpu_custom_call.1} parent=1 // pred_check
      _
    $region15: #{tpu_custom_call.1} parent=1 // pred_check_branch
      %53 = sbr.rel (0) target = $region17
    $region16: #{tpu_custom_call.1} parent=1 // pred_region
      %55 = dma.done [#allocation6], 128
    $region17: #{tpu_custom_call.1} parent=1 // pred_fallthru
      _
    %s56 = sadd.s32 0, 0
    %p57 = scmp.lt.s32.totalorder %s56, 0
    %s58 = scalar_select %p57, %s56, 0
    %s59 = smul.u32 2, %s58
    %s60 = sadd.s32 0, 0
    %p61 = scmp.lt.s32.totalorder %s60, 0
    %s62 = scalar_select %p61, %s60, 0
    %s63 = smul.u32 2, %s62
    %p64 = scmp.eq.s32.totalorder 0, 0
    // Predicated region
    $region18: #{tpu_custom_call.1} parent=1 // pred_check
      %p65 = pneg %p64
    $region19: #{tpu_custom_call.1} parent=1 // pred_check_branch
      %67 = sbr.rel (%p65) target = $region21
    $region20: #{tpu_custom_call.1} parent=1 // pred_region
      %68 = vst [vmem:[#allocation7] sm:$0xff] 0.0
    $region21: #{tpu_custom_call.1} parent=1 // pred_fallthru
      _
    %v69 = vld [vmem:[#allocation7] sm:$0xff]
    %v70 = vld [vmem:[#allocation2] sm:$0xff]
    %v71 = vld [vmem:[#allocation2 + $0x8] sm:$0xff]
    %v72 = vld [vmem:[#allocation5] sm:$0xf]
    %v73 = vld [vmem:[#allocation5 + $0x4] sm:$0xf]
    %v74 = vunpack.c.l.bf16 %v72
    %v75 = vunpack.c.l.bf16 %v73
    %v76 = vxor.u32 %v70, 2147483648
    %v77 = vxor.u32 %v71, 2147483648
    %v78 = vmul.f32 %v76, 1.442695
    %v79 = vpow.pop %v78
    %v80 = vmul.f32 %v77, 1.442695
    %v81 = vpow.pop %v80
    %v82 = vadd.f32 %v79, 1.0
    %v83 = vadd.f32 %v81, 1.0
    %v84 = vrcp.pop %v82
    %v85 = vmul.f32 %v82, %v84
    %v86 = vsub.f32 1.0, %v85
    %v87 = vmul.f32 %v84, %v86
    %v88 = vadd.f32 %v84, %v87
    %vm89 = vweird.f32 %v82
    %vm90 = vweird.f32 %v84
    %vm91 = vmor %vm89, %vm90
    %v92 = vsel %vm91, %v84, %v88
    %v93 = vand.u32 2147483647, %v82
    %vm94 = vcmp.eq.f32.partialorder %v93, 8.507059e+37
    %v95 = vand.u32 %v82, 2147483648
    %v96 = vor.u32 1.1754944e-38, %v95
    %v97 = vsel %vm94, %v96, %v92
    %v98 = vmul.f32 1.0, %v97
    %v99 = vrcp.pop %v83
    %v100 = vmul.f32 %v83, %v99
    %v101 = vsub.f32 1.0, %v100
    %v102 = vmul.f32 %v99, %v101
    %v103 = vadd.f32 %v99, %v102
    %vm104 = vweird.f32 %v83
    %vm105 = vweird.f32 %v99
    %vm106 = vmor %vm104, %vm105
    %v107 = vsel %vm106, %v99, %v103
    %v108 = vand.u32 2147483647, %v83
    %vm109 = vcmp.eq.f32.partialorder %v108, 8.507059e+37
    %v110 = vand.u32 %v83, 2147483648
    %v111 = vor.u32 1.1754944e-38, %v110
    %v112 = vsel %vm109, %v111, %v107
    %v113 = vmul.f32 1.0, %v112
    %v114 = vmax.f32 %v98, 1e-08
    %v115 = vmax.f32 %v113, 1e-08
    %v116 = vmax.f32 %v74, 1e-08
    %v117 = vmax.f32 %v75, 1e-08
    %v118 = vmin.f32 %v116, 1.0
    %v119 = vmin.f32 %v117, 1.0
    %v120 = vsub.f32 1.0, %v118
    %v121 = vsub.f32 1.0, %v119
    %v122 = vsub.f32 1.0, %v114
    %v123 = vsub.f32 1.0, %v115
    %v124 = vmul.f32 %v120, %v122
    %v125 = vmul.f32 %v121, %v123
    %v126 = vmul.f32 %v118, %v114
    %v127 = vmul.f32 %v119, %v115
    %v128 = vadd.f32 %v124, %v126
    %v129 = vadd.f32 %v125, %v127
    %v130 = vsub.f32 1.0, %v128
    %v131 = vsub.f32 1.0, %v129
    %v132 = vmul.f32 %v118, -0.8
    %v133 = vmul.f32 %v119, -0.8
    %v134 = vadd.f32 %v132, -0.6
    %v135 = vadd.f32 %v133, -0.6
    %v136 = vmul.f32 %v130, %v130
    %v137 = vmul.f32 %v131, %v131
    %v138 = vlog2.pop %v128
    %v139 = vmul.f32 %v138, 0.6931472
    %v140 = vlog2.pop %v129
    %v141 = vmul.f32 %v140, 0.6931472
    %v142 = vmul.f32 %v136, %v139
    %v143 = vmul.f32 %v137, %v141
    %v144 = vmul.f32 %v142, %v134
    %v145 = vmul.f32 %v143, %v135
    %v146 = vadd.f32 %v144, %v145
    %v147 = vadd.f32 %v146, 0.0
    %v148 = vadd.f32 %v69, %v147
    %149 = vst [vmem:[#allocation7] sm:$0xff] %v148
    // Predicated region
    $region22: #{tpu_custom_call.1} parent=1 // pred_check
      _
    $region23: #{tpu_custom_call.1} parent=1 // pred_check_branch
      %151 = sbr.rel (0) target = $region25
    $region24: #{tpu_custom_call.1} parent=1 // pred_region
      %153 = vsyncadd [#allocation4], 0
      %s155 = sshll.u32 [#allocation7], 4
      %s156 = int_to_ptr.vmem [resolvable:$true] %s155
      %s157 = sshll.u32 %s2, 4
      %s158 = int_to_ptr.hbm [resolvable:$true] %s157
      %160 = dma.vmem_to_hbm [thread:$0]  %s156, 128, %s158, [#allocation4]
    $region25: #{tpu_custom_call.1} parent=1 // pred_fallthru
      _
    // Predicated region
    $region26: #{tpu_custom_call.1} parent=1 // pred_check
      _
    $region27: #{tpu_custom_call.1} parent=1 // pred_check_branch
      %162 = sbr.rel (0) target = $region29
    $region28: #{tpu_custom_call.1} parent=1 // pred_region
      %164 = dma.done [#allocation4], 128
    $region29: #{tpu_custom_call.1} parent=1 // pred_fallthru
      _
    %165 = vsyncpa [#allocation3], 1
    %166 = vsyncpa [#allocation6], 1
    %167 = vsyncpa [#allocation4], 1

</llo_original>
